<compile_context>
chip_gen: v7x
topology: tpu7x:2x2x1
jax: 0.10.0
libtpu: 0.0.40
codegen_flags: <defaults>
</compile_context>

<pallas_src>
import jax
import jax.numpy as jnp
from jax.experimental import pallas as pl
from jax.experimental.pallas import tpu as pltpu

LANES = 128                 # TPU lane width (last dim of a vreg)
DEFAULT_BLOCK_ROWS = 2048   # 2048 x 128 x 4B = 1 MiB per block buffer


def policy_mean_kernel(state_ref, weight_ref, mean_ref):
    # Pure lane-dense vmul: (block_rows, 128) * (1, 128) broadcast over sublanes.
    mean_ref[...] = state_ref[...] * weight_ref[...]


def policy_forward(state, weight, logstd, *, block_rows=DEFAULT_BLOCK_ROWS):
    """Forward pass of `Policy`: returns (mean, std) parameterizing Normal(mean, std)."""
    B, A = state.shape
    dtype = state.dtype
    assert block_rows % 8 == 0, "block_rows must be a multiple of 8 (sublane tiling)"

    # ---- std: tiny; computed outside the kernel (no (B, A) HBM kernel writeback) ----
    std = jnp.broadcast_to(
        jnp.exp(logstd.astype(jnp.float32)).astype(dtype), (B, A)
    )

    n = B * A
    # Only take the lane-dense Pallas path when the (rows, 128) view is a
    # zero-copy bitcast; otherwise a pad + output slice would each cost a full
    # extra HBM pass that the kernel can never win back.
    if n % LANES != 0 or LANES % A != 0:
        mean = state * weight.astype(dtype)      # fused XLA, already near roofline
        return mean, std

    rows = n // LANES
    # Single block == full extent when small (legal even if rows % 8 != 0);
    # otherwise tile with block_rows (multiple of 8) and let Pallas mask the
    # ragged last block.
    block_rows_eff = rows if rows <= block_rows else block_rows
    grid = (pl.cdiv(rows, block_rows_eff),)

    # Weight row [w0, w1, w0, w1, ...] — grid-invariant, hoisted to the wrapper.
    w_row = jnp.tile(weight.astype(dtype).reshape(A), LANES // A).reshape(1, LANES)
    state2d = state.reshape(rows, LANES)         # zero-copy (row-major) view

    # Size the VMEM request to the real working set (double-buffered in + out)
    # instead of a blanket 32 MiB — leaves headroom for surrounding fusions.
    block_bytes = block_rows_eff * LANES * state.dtype.itemsize
    vmem_limit = int(max(2 * 1024 * 1024, 4 * block_bytes + 512 * 1024))

    mean2d = pl.pallas_call(
        policy_mean_kernel,
        out_shape=jax.ShapeDtypeStruct((rows, LANES), dtype),
        grid=grid,
        in_specs=[
            pl.BlockSpec((block_rows_eff, LANES), lambda i: (i, 0)),  # state tile
            pl.BlockSpec((1, LANES), lambda i: (0, 0)),               # weight row
        ],
        out_specs=pl.BlockSpec((block_rows_eff, LANES), lambda i: (i, 0)),
        compiler_params=pltpu.CompilerParams(
            # TODO(synk): on v7x, pltpu.CORE_PARALLEL on this axis shards the
            # stream across both TensorCores (~2x BW); "parallel" kept here for
            # portability across v5e/v6e/v7x.
            dimension_semantics=("parallel",),
            vmem_limit_bytes=vmem_limit,
        ),
    )(state2d, w_row)

    mean = mean2d.reshape(B, A)                  # zero-copy view back to (B, A)
    return mean, std


if __name__ == "__main__":
    key = jax.random.PRNGKey(0)
    k_w, k_s1, k_s2, k_s3 = jax.random.split(key, 4)

    # Deterministic parameter init mirroring Policy.__init__:
    #   weight = weight_scale * randn(2); logstd = zeros(1, 1)
    weight_scale = 0.1
    weight = weight_scale * jax.random.normal(k_w, (2,), dtype=jnp.float32)
    logstd = jnp.zeros((1, 1), dtype=jnp.float32)

    fwd = jax.jit(policy_forward, static_argnames=("block_rows",))

    def run_and_check(state, block_rows=DEFAULT_BLOCK_ROWS):
        mean, std = fwd(state, weight, logstd, block_rows=block_rows)
        mean = jax.block_until_ready(mean)
        std = jax.block_until_ready(std)
        assert jnp.allclose(mean, state * weight, atol=1e-6), "mean mismatch"
        assert jnp.allclose(
            std, jnp.broadcast_to(jnp.exp(logstd), mean.shape), atol=1e-6
        ), "std mismatch"

    # Small aligned batch (B=64, A=2 -> n=128): single-block lane-dense kernel path.
    run_and_check(jax.random.normal(k_s1, (64, 2), dtype=jnp.float32))

    # Multi-block grid with a ragged last block: rows=10, block_rows=8 -> 2 steps,
    # last block masked by Pallas (no wrapper-side padding).
    run_and_check(jax.random.normal(k_s2, (640, 2), dtype=jnp.float32), block_rows=8)

    # Unaligned batch (n % 128 != 0): fused-XLA fallback path (no pad/slice copies).
    run_and_check(jax.random.normal(k_s3, (8, 2), dtype=jnp.float32))

    print("KERNEL_OK")
</pallas_src>

<mosaic_0001>
module attributes {stable_mosaic.version = 11 : i64} {
  func.func @policy_mean_kernel(%arg0: i32, %arg1: memref<1x128xf32, #tpu.memory_space<vmem>>, %arg2: memref<1x128xf32, #tpu.memory_space<vmem>>, %arg3: memref<1x128xf32, #tpu.memory_space<vmem>>) attributes {dimension_semantics = [#tpu.dimension_semantics<parallel>], iteration_bounds = array<i64: 1>, scalar_prefetch = 0 : i64, scratch_operands = 0 : i64, tpu.core_type = #tpu.core_type<tc>, window_params = [{transform_indices = @transform_0, window_bounds = array<i64: 1, 128>}, {pipeline_mode = #tpu.pipeline_mode<synchronous>, transform_indices = @transform_1, window_bounds = array<i64: 1, 128>}, {transform_indices = @transform_2, window_bounds = array<i64: 1, 128>}]} {
    %c0 = arith.constant 0 : index
    %c0_0 = arith.constant 0 : index
    %0 = vector.load %arg1[%c0, %c0_0] : memref<1x128xf32, #tpu.memory_space<vmem>>, vector<1x128xf32>
    %c0_1 = arith.constant 0 : index
    %c0_2 = arith.constant 0 : index
    %1 = vector.load %arg2[%c0_1, %c0_2] : memref<1x128xf32, #tpu.memory_space<vmem>>, vector<1x128xf32>
    %2 = arith.mulf %0, %1 : vector<1x128xf32>
    %c0_3 = arith.constant 0 : index
    %c0_4 = arith.constant 0 : index
    %3 = vector.load %arg3[%c0_3, %c0_4] : memref<1x128xf32, #tpu.memory_space<vmem>>, vector<1x128xf32>
    tpu.vector_store %arg3[%c0_3, %c0_4], %2 {strides = array<i32>} : memref<1x128xf32, #tpu.memory_space<vmem>>, vector<1x128xf32>,
    return
  }
  func.func @transform_0(%arg0: i32) -> (i32, i32) {
    %c0_i32 = arith.constant 0 : i32
    %c0_i32_0 = arith.constant 0 : i32
    return %arg0, %c0_i32 : i32, i32
  }
  func.func @transform_1(%arg0: i32) -> (i32, i32) {
    %c0_i32 = arith.constant 0 : i32
    %c0_i32_0 = arith.constant 0 : i32
    %c0_i32_1 = arith.constant 0 : i32
    return %c0_i32, %c0_i32_0 : i32, i32
  }
  func.func @transform_2(%arg0: i32) -> (i32, i32) {
    %c0_i32 = arith.constant 0 : i32
    %c0_i32_0 = arith.constant 0 : i32
    return %arg0, %c0_i32 : i32, i32
  }
}

</mosaic_0001>

<llo_original>
// kernel: tile.8
$region0: #{tile.8}
  #allocation0 [shape = 's32[1]{0}', space=sflag, size = 0x4, scoped, tag = 'scoped memory for tile.8']
  %s0 = inlined_call_operand.vmem [shape: f32[2], index: 0, kind: input, shape index: {}]
  %s1 = inlined_call_operand.vmem [shape: f32[64,2], index: 1, kind: output, shape index: {}]
  // Predicated region
  $region2: #{tile.8} parent=0 // pred_check
    _
  $region3: #{tile.8} parent=0 // pred_check_branch
    %3 = sbr.rel (0) target = $region5
  $region4: #{tile.8} parent=0 // pred_region
    _
  $region5: #{tile.8} parent=0 // pred_fallthru
    _
  %v4 = vld [vmem:[%s0] ss:$0 sm:$0xff]
  %5 = vst [vmem:[%s1] sm:$0xff] %v4
  %s6 = scalar_lea.vmem %s1, 8
  %7 = vst [vmem:[%s6] sm:$0xff] %v4
  %s8 = scalar_lea.vmem %s1, 16
  %9 = vst [vmem:[%s8] sm:$0xff] %v4
  %s10 = scalar_lea.vmem %s1, 24
  %11 = vst [vmem:[%s10] sm:$0xff] %v4
  %s12 = scalar_lea.vmem %s1, 32
  %13 = vst [vmem:[%s12] sm:$0xff] %v4
  %s14 = scalar_lea.vmem %s1, 40
  %15 = vst [vmem:[%s14] sm:$0xff] %v4
  %s16 = scalar_lea.vmem %s1, 48
  %17 = vst [vmem:[%s16] sm:$0xff] %v4
  %s18 = scalar_lea.vmem %s1, 56
  %19 = vst [vmem:[%s18] sm:$0xff] %v4

// kernel: policy_forward.1
$region0: #{policy_forward.1}
  #allocation0 [shape = 'u32[]', space=smem, size = 0x4, offset = 0x4, fixed_abs, tag = 'smem constant byte address 0x4 - core index']
  #allocation1 [shape = 'u32[144,128]{1,0:T(1,128)}', space=vmem, size = 0x12000, scoped, tag = 'internal scratch']
  %s0 = inlined_call_operand.vmem [shape: f32[1,128], index: 0, kind: input, shape index: {}]
  %s1 = inlined_call_operand.vmem [shape: f32[1,128], index: 1, kind: input, shape index: {}]
  %s2 = inlined_call_operand.vmem [shape: f32[1,128], index: 2, kind: output, shape index: {}]
  %s3 = sld [smem:[#allocation0]]
  $region18: #{policy_forward.1} parent=0
    _
  %s5 = ssub.s32 1, %s3
  %s6 = scalar_select 0, %s5, %s3
  // Predicated region
  $region2: #{policy_forward.1} parent=0 // pred_check
    _
  $region3: #{policy_forward.1} parent=0 // pred_check_branch
    %8 = sbr.rel (0) target = $region5
  $region4: #{policy_forward.1} parent=0 // pred_region
    _
  $region5: #{policy_forward.1} parent=0 // pred_fallthru
    _
  // Predicated region
  $region6: #{policy_forward.1} parent=0 // pred_check
    _
  $region7: #{policy_forward.1} parent=0 // pred_check_branch
    %10 = sbr.rel (0) target = $region9
  $region8: #{policy_forward.1} parent=0 // pred_region
    _
  $region9: #{policy_forward.1} parent=0 // pred_fallthru
    _
  %v11 = vld [vmem:[%s0] sm:$0x1]
  %v12 = vld [vmem:[%s1] sm:$0x1]
  %v13 = vmul.f32 %v11, %v12
  %14 = vst [vmem:[%s2] sm:$0x1] %v13
  // Predicated region
  $region10: #{policy_forward.1} parent=0 // pred_check
    _
  $region11: #{policy_forward.1} parent=0 // pred_check_branch
    %16 = sbr.rel (0) target = $region13
  $region12: #{policy_forward.1} parent=0 // pred_region
    _
  $region13: #{policy_forward.1} parent=0 // pred_fallthru
    _
  // Predicated region
  $region14: #{policy_forward.1} parent=0 // pred_check
    _
  $region15: #{policy_forward.1} parent=0 // pred_check_branch
    %18 = sbr.rel (0) target = $region17
  $region16: #{policy_forward.1} parent=0 // pred_region
    _
  $region17: #{policy_forward.1} parent=0 // pred_fallthru
    _

</llo_original>
